<compile_context>
chip_gen: v5e
topology: v5e:2x2
jax: 0.10.0
libtpu: 0.0.40
codegen_flags: <defaults>
</compile_context>

<pallas_src>
import jax
import jax.numpy as jnp
from jax.experimental import pallas as pl
from jax.experimental.pallas import tpu as pltpu  # noqa: F401  (kept for CompilerParams use at scale)


def _attn_general_kernel(h_ref, eo_ref, w_ref, b_ref, out_ref):
    """Single-invocation kernel; whole problem resident in VMEM.

    Block shapes seen by the kernel (== full arrays):
      h_ref:   (B, H)     hidden
      eo_ref:  (B, L, H)  encoder_outputs, batch-major (contiguous per batch row)
      w_ref:   (H, H)     PyTorch nn.Linear weight, (out, in) layout
      b_ref:   (1, H)     bias
      out_ref: (B, L)     softmax(energies) — one store for all batch rows
    """
    h = h_ref[...]          # (B, H)
    w = w_ref[...]          # (H, H)
    bias = b_ref[...]       # (1, H)
    eo = eo_ref[...]        # (B, L, H)

    # Algebraic rewrite of the 'general' score:
    #   score(x, y) = x . (W y + bias) = (x @ W) . y + x . bias
    # One batched projection matmul for ALL B rows (contract W on its leading dim).
    q = jax.lax.dot_general(
        h, w, dimension_numbers=(((1,), (0,)), ((), ())),
        preferred_element_type=jnp.float32)                      # (B, H)
    c = jnp.sum(h * bias, axis=-1, keepdims=True)                # (B, 1)

    # energies[b, l] = q[b] . eo[b, l]  — VPU broadcast-multiply + lane reduce.
    # (For large L, replace with L-tiled (B,H)@(H,128) MXU feeds; see header notes.)
    energies = jnp.sum(q[:, None, :] * eo, axis=-1) + c          # (B, L)

    # Softmax over L (== F.softmax on a 2-D (B, L) input, dim=1).
    m = jnp.max(energies, axis=-1, keepdims=True)
    e = jnp.exp(energies - m)
    denom = jnp.sum(e, axis=-1, keepdims=True)
    out_ref[...] = e / denom                                     # (B, L), single store


def attn_general(hidden, encoder_outputs, weight, bias):
    """hidden: (B, H), encoder_outputs: (L, B, H), weight: (H, H), bias: (H,)
    Returns attention weights of shape (B, 1, L), matching the PyTorch module."""
    L, B, H = encoder_outputs.shape

    # One wrapper-side transpose to batch-major so each batch row is contiguous in HBM and
    # the kernel consumes it directly (replaces the old per-step strided 128-byte gathers).
    eo_blh = jnp.transpose(encoder_outputs, (1, 0, 2))           # (B, L, H)
    bias2 = bias.reshape(1, H)                                   # (1, H)

    out_bl = pl.pallas_call(
        _attn_general_kernel,
        out_shape=jax.ShapeDtypeStruct((B, L), jnp.float32),
        grid=(1,),                                               # single step: everything fits VMEM
        in_specs=[
            pl.BlockSpec((B, H), lambda i: (0, 0)),              # hidden, whole array
            pl.BlockSpec((B, L, H), lambda i: (0, 0, 0)),        # encoder_outputs, whole array
            pl.BlockSpec((H, H), lambda i: (0, 0)),              # weight, whole array
            pl.BlockSpec((1, H), lambda i: (0, 0)),              # bias
        ],
        out_specs=pl.BlockSpec((B, L), lambda i: (0, 0)),        # one (B, L) output block
    )(hidden, eo_blh, weight, bias2)

    # unsqueeze(1) as a metadata-only reshape in the wrapper.
    return out_bl.reshape(B, 1, L)


def attn_general_ref(hidden, encoder_outputs, weight, bias):
    """Pure-JAX reference mirroring the PyTorch double loop."""
    proj = jnp.einsum('lbh,oh->lbo', encoder_outputs, weight) + bias   # nn.Linear
    energies = jnp.einsum('bh,lbh->bl', hidden, proj)                  # (B, L)
    return jax.nn.softmax(energies, axis=-1)[:, None, :]               # (B, 1, L)


if __name__ == "__main__":
    # Small shapes consistent with the module: seq len L=8, batch B=2, hidden H=32
    L, B, H = 8, 2, 32
    key = jax.random.PRNGKey(0)
    k1, k2, k3, k4 = jax.random.split(key, 4)

    hidden = jax.random.normal(k1, (B, H), dtype=jnp.float32)
    encoder_outputs = jax.random.normal(k2, (L, B, H), dtype=jnp.float32)

    # Deterministic nn.Linear(hidden_size, hidden_size) parameters (PyTorch (out, in) layout)
    bound = 1.0 / (H ** 0.5)
    weight = jax.random.uniform(k3, (H, H), minval=-bound, maxval=bound, dtype=jnp.float32)
    bias = jax.random.uniform(k4, (H,), minval=-bound, maxval=bound, dtype=jnp.float32)

    out = attn_general(hidden, encoder_outputs, weight, bias)
    jax.block_until_ready(out)

    ref = attn_general_ref(hidden, encoder_outputs, weight, bias)
    assert out.shape == (B, 1, L)
    assert jnp.allclose(out, ref, atol=1e-4, rtol=1e-4)

    # TODO(synk): the 'concat' scoring branch references self.self.v in the original PyTorch
    # (a bug) and is not implemented; 'dot' is the W=I, bias=0 special case of this kernel.
    print("KERNEL_OK")
</pallas_src>

<mosaic_0001>
module attributes {stable_mosaic.version = 11 : i64} {
  func.func @_attn_general_kernel(%arg0: i32, %arg1: memref<2x32xf32, #tpu.memory_space<vmem>>, %arg2: memref<2x8x32xf32, #tpu.memory_space<vmem>>, %arg3: memref<32x32xf32, #tpu.memory_space<vmem>>, %arg4: memref<1x32xf32, #tpu.memory_space<vmem>>, %arg5: memref<2x8xf32, #tpu.memory_space<vmem>>) attributes {dimension_semantics = [#tpu.dimension_semantics<arbitrary>], iteration_bounds = array<i64: 1>, scalar_prefetch = 0 : i64, scratch_operands = 0 : i64, tpu.core_type = #tpu.core_type<tc>, window_params = [{pipeline_mode = #tpu.pipeline_mode<synchronous>, transform_indices = @transform_0, window_bounds = array<i64: 2, 32>}, {pipeline_mode = #tpu.pipeline_mode<synchronous>, transform_indices = @transform_1, window_bounds = array<i64: 2, 8, 32>}, {pipeline_mode = #tpu.pipeline_mode<synchronous>, transform_indices = @transform_2, window_bounds = array<i64: 32, 32>}, {pipeline_mode = #tpu.pipeline_mode<synchronous>, transform_indices = @transform_3, window_bounds = array<i64: 1, 32>}, {pipeline_mode = #tpu.pipeline_mode<synchronous>, transform_indices = @transform_4, window_bounds = array<i64: 2, 8>}]} {
    %c0 = arith.constant 0 : index
    %c0_0 = arith.constant 0 : index
    %0 = vector.load %arg1[%c0, %c0_0] : memref<2x32xf32, #tpu.memory_space<vmem>>, vector<2x32xf32>
    %c0_1 = arith.constant 0 : index
    %c0_2 = arith.constant 0 : index
    %1 = vector.load %arg3[%c0_1, %c0_2] : memref<32x32xf32, #tpu.memory_space<vmem>>, vector<32x32xf32>
    %c0_3 = arith.constant 0 : index
    %c0_4 = arith.constant 0 : index
    %2 = vector.load %arg4[%c0_3, %c0_4] : memref<1x32xf32, #tpu.memory_space<vmem>>, vector<1x32xf32>
    %c0_5 = arith.constant 0 : index
    %c0_6 = arith.constant 0 : index
    %c0_7 = arith.constant 0 : index
    %3 = vector.load %arg2[%c0_5, %c0_6, %c0_7] : memref<2x8x32xf32, #tpu.memory_space<vmem>>, vector<2x8x32xf32>
    %cst = arith.constant dense<0.000000e+00> : vector<2x32xf32>
    %4 = tpu.matmul %0, %1, %cst {dimension_numbers = #tpu.dot_dimension_numbers<[1], [0], [0], [1], [0, 0, 1, 1], [], []>} : vector<2x32xf32>, vector<32x32xf32>, vector<2x32xf32> -> vector<2x32xf32>
    %5 = vector.broadcast %2 : vector<1x32xf32> to vector<2x32xf32>
    %6 = arith.mulf %0, %5 : vector<2x32xf32>
    %cst_8 = arith.constant dense<0.000000e+00> : vector<2xf32>
    %7 = vector.multi_reduction <add>, %6, %cst_8 [1] : vector<2x32xf32> to vector<2xf32>
    %8 = vector.shape_cast %7 : vector<2xf32> to vector<2x1xf32>
    %9 = vector.shape_cast %4 : vector<2x32xf32> to vector<2x1x32xf32>
    %10 = vector.broadcast %9 : vector<2x1x32xf32> to vector<2x8x32xf32>
    %11 = arith.mulf %10, %3 : vector<2x8x32xf32>
    %cst_9 = arith.constant dense<0.000000e+00> : vector<2x8xf32>
    %12 = vector.multi_reduction <add>, %11, %cst_9 [2] : vector<2x8x32xf32> to vector<2x8xf32>
    %13 = vector.broadcast %8 : vector<2x1xf32> to vector<2x8xf32>
    %14 = arith.addf %12, %13 : vector<2x8xf32>
    %cst_10 = arith.constant dense<0xFF800000> : vector<2xf32>
    %15 = vector.multi_reduction <maximumf>, %14, %cst_10 [1] : vector<2x8xf32> to vector<2xf32>
    %16 = vector.shape_cast %15 : vector<2xf32> to vector<2x1xf32>
    %17 = vector.broadcast %16 : vector<2x1xf32> to vector<2x8xf32>
    %18 = arith.subf %14, %17 : vector<2x8xf32>
    %19 = math.exp %18 : vector<2x8xf32>
    %cst_11 = arith.constant dense<0.000000e+00> : vector<2xf32>
    %20 = vector.multi_reduction <add>, %19, %cst_11 [1] : vector<2x8xf32> to vector<2xf32>
    %21 = vector.shape_cast %20 : vector<2xf32> to vector<2x1xf32>
    %22 = vector.broadcast %21 : vector<2x1xf32> to vector<2x8xf32>
    %23 = arith.divf %19, %22 : vector<2x8xf32>
    %c0_12 = arith.constant 0 : index
    %c0_13 = arith.constant 0 : index
    %24 = vector.load %arg5[%c0_12, %c0_13] : memref<2x8xf32, #tpu.memory_space<vmem>>, vector<2x8xf32>
    tpu.vector_store %arg5[%c0_12, %c0_13], %23 {strides = array<i32>} : memref<2x8xf32, #tpu.memory_space<vmem>>, vector<2x8xf32>,
    return
  }
  func.func @transform_0(%arg0: i32) -> (i32, i32) {
    %c0_i32 = arith.constant 0 : i32
    %c0_i32_0 = arith.constant 0 : i32
    %c0_i32_1 = arith.constant 0 : i32
    return %c0_i32, %c0_i32_0 : i32, i32
  }
  func.func @transform_1(%arg0: i32) -> (i32, i32, i32) {
    %c0_i32 = arith.constant 0 : i32
    %c0_i32_0 = arith.constant 0 : i32
    %c0_i32_1 = arith.constant 0 : i32
    %c0_i32_2 = arith.constant 0 : i32
    return %c0_i32, %c0_i32_0, %c0_i32_1 : i32, i32, i32
  }
  func.func @transform_2(%arg0: i32) -> (i32, i32) {
    %c0_i32 = arith.constant 0 : i32
    %c0_i32_0 = arith.constant 0 : i32
    %c0_i32_1 = arith.constant 0 : i32
    return %c0_i32, %c0_i32_0 : i32, i32
  }
  func.func @transform_3(%arg0: i32) -> (i32, i32) {
    %c0_i32 = arith.constant 0 : i32
    %c0_i32_0 = arith.constant 0 : i32
    %c0_i32_1 = arith.constant 0 : i32
    return %c0_i32, %c0_i32_0 : i32, i32
  }
  func.func @transform_4(%arg0: i32) -> (i32, i32) {
    %c0_i32 = arith.constant 0 : i32
    %c0_i32_0 = arith.constant 0 : i32
    %c0_i32_1 = arith.constant 0 : i32
    return %c0_i32, %c0_i32_0 : i32, i32
  }
}

</mosaic_0001>

<llo_original>
// kernel: tpu_custom_call.1
$region0: #{tpu_custom_call.1}
  #allocation0 [shape = 'u32[]', space=smem, size = 0x4, offset = 0x4, fixed_abs, tag = 'smem constant byte address 0x4 - core index']
  #allocation1 [shape = 'u32[72,128]{1,0:T(1,128)}', space=vmem, size = 0x9000, scoped, tag = 'internal scratch']
  %s0 = inlined_call_operand.hbm [shape: f32[2,32], index: 0, kind: input, shape index: {}]
  %s1 = inlined_call_operand.hbm [shape: f32[2,8,32], index: 1, kind: input, shape index: {}]
  %s2 = inlined_call_operand.hbm [shape: f32[32,32], index: 2, kind: input, shape index: {}]
  %s3 = inlined_call_operand.vmem [shape: f32[1,32], index: 3, kind: input, shape index: {}]
  %s4 = inlined_call_operand.hbm [shape: f32[2,8], index: 4, kind: output, shape index: {}]
  %s5 = sld [smem:[#allocation0]]
  $region38: #{tpu_custom_call.1} parent=0
    _
  %s7 = ssub.s32 1, %s5
  %s8 = scalar_select 0, %s7, %s5
  $region1: #{tpu_custom_call.1} parent=0
    #allocation2 [shape = 'u8[1024]{0}', space=vmem, size = 0x400, scoped, tag = 'input window, operand 0, single buffered']
    #allocation3 [shape = 's32[1]{0}', space=sflag, size = 0x4, scoped, tag = 'scoped memory for tpu_custom_call.1']
    #allocation4 [shape = 's32[1]{0}', space=sflag, size = 0x4, scoped, tag = 'scoped memory for tpu_custom_call.1']
    #allocation5 [shape = 'u8[8192]{0}', space=vmem, size = 0x2000, scoped, tag = 'input window, operand 1, single buffered']
    #allocation6 [shape = 's32[1]{0}', space=sflag, size = 0x4, scoped, tag = 'scoped memory for tpu_custom_call.1']
    #allocation7 [shape = 'u8[16384]{0}', space=vmem, size = 0x4000, scoped, tag = 'input window, operand 2, single buffered']
    #allocation8 [shape = 'u8[1024]{0}', space=vmem, size = 0x400, scoped, tag = 'output window, operand 0, single buffered']
    %9 = vsyncpa [#allocation3], 0
    %10 = vsyncpa [#allocation6], 0
    %11 = vsyncpa [#allocation4], 0
    // Predicated region
    $region2: #{tpu_custom_call.1} parent=1 // pred_check
      _
    $region3: #{tpu_custom_call.1} parent=1 // pred_check_branch
      %13 = sbr.rel (0) target = $region5
    $region4: #{tpu_custom_call.1} parent=1 // pred_region
      %15 = vsyncadd [#allocation3], 0
      %s17 = sshll.u32 %s0, 4
      %s18 = int_to_ptr.hbm [resolvable:$true] %s17
      %s19 = sshll.u32 [#allocation2], 4
      %s20 = int_to_ptr.vmem [resolvable:$true] %s19
      %22 = dma.hbm_to_vmem [thread:$0]  %s18, 32, %s20, [#allocation3]
    $region5: #{tpu_custom_call.1} parent=1 // pred_fallthru
      _
    // Predicated region
    $region6: #{tpu_custom_call.1} parent=1 // pred_check
      _
    $region7: #{tpu_custom_call.1} parent=1 // pred_check_branch
      %24 = sbr.rel (0) target = $region9
    $region8: #{tpu_custom_call.1} parent=1 // pred_region
      %26 = vsyncadd [#allocation6], 0
      %s27 = sshll.u32 %s1, 4
      %s28 = int_to_ptr.hbm [resolvable:$true] %s27
      %s29 = sshll.u32 [#allocation5], 4
      %s30 = int_to_ptr.vmem [resolvable:$true] %s29
      %35 = dma.hbm_to_vmem [thread:$0]  %s28, 256, %s30, [#allocation6], 128, 128, 8
    $region9: #{tpu_custom_call.1} parent=1 // pred_fallthru
      _
    // Predicated region
    $region10: #{tpu_custom_call.1} parent=1 // pred_check
      _
    $region11: #{tpu_custom_call.1} parent=1 // pred_check_branch
      %37 = sbr.rel (0) target = $region13
    $region12: #{tpu_custom_call.1} parent=1 // pred_region
      %39 = vsyncadd [#allocation6], 0
      %s40 = sshll.u32 %s2, 4
      %s41 = int_to_ptr.hbm [resolvable:$true] %s40
      %s42 = sshll.u32 [#allocation7], 4
      %s43 = int_to_ptr.vmem [resolvable:$true] %s42
      %48 = dma.hbm_to_vmem [thread:$0]  %s41, 512, %s43, [#allocation6], 128, 128, 8
    $region13: #{tpu_custom_call.1} parent=1 // pred_fallthru
      _
    // Predicated region
    $region14: #{tpu_custom_call.1} parent=1 // pred_check
      _
    $region15: #{tpu_custom_call.1} parent=1 // pred_check_branch
      %50 = sbr.rel (0) target = $region17
    $region16: #{tpu_custom_call.1} parent=1 // pred_region
      _
    $region17: #{tpu_custom_call.1} parent=1 // pred_fallthru
      _
    // Predicated region
    $region18: #{tpu_custom_call.1} parent=1 // pred_check
      _
    $region19: #{tpu_custom_call.1} parent=1 // pred_check_branch
      %52 = sbr.rel (0) target = $region21
    $region20: #{tpu_custom_call.1} parent=1 // pred_region
      %54 = dma.done [#allocation3], 32
    $region21: #{tpu_custom_call.1} parent=1 // pred_fallthru
      _
    // Predicated region
    $region22: #{tpu_custom_call.1} parent=1 // pred_check
      _
    $region23: #{tpu_custom_call.1} parent=1 // pred_check_branch
      %56 = sbr.rel (0) target = $region25
    $region24: #{tpu_custom_call.1} parent=1 // pred_region
      %58 = dma.done [#allocation6], 256
    $region25: #{tpu_custom_call.1} parent=1 // pred_fallthru
      _
    // Predicated region
    $region26: #{tpu_custom_call.1} parent=1 // pred_check
      _
    $region27: #{tpu_custom_call.1} parent=1 // pred_check_branch
      %60 = sbr.rel (0) target = $region29
    $region28: #{tpu_custom_call.1} parent=1 // pred_region
      %62 = dma.done [#allocation6], 512
    $region29: #{tpu_custom_call.1} parent=1 // pred_fallthru
      _
    %v63 = vld [vmem:[#allocation2] sm:$0x3]
    %v64 = vld [vmem:[#allocation7] sm:$0xff]
    %v65 = vld [vmem:[#allocation7 + $0x8] sm:$0xff]
    %v66 = vld [vmem:[#allocation7 + $0x10] sm:$0xff]
    %v67 = vld [vmem:[#allocation7 + $0x18] sm:$0xff]
    %v68 = vld [vmem:[%s3] sm:$0x1]
    %v69 = vld [vmem:[#allocation5] sm:$0xff]
    %v70 = vld [vmem:[#allocation5 + $0x8] sm:$0xff]
    %vm71 = vcmask 261120
    %v73 = vsel %vm71, %v63, 0
    %75 = vmatpush.msra.mxu0 0.0
    %76 = vmatpush.msra.mxu0 0.0
    %77 = vmatpush.msra.mxu0 0.0
    %78 = vmatpush.msra.mxu0 0.0
    %79 = vmatpush.msra.mxu0 0.0
    %80 = vmatpush.msra.mxu0 0.0
    %81 = vmatpush.msra.mxu0 0.0
    %82 = vmatpush.msra.mxu0 0.0
    %83 = vmatpush.msra.mxu0 0.0
    %84 = vmatpush.msra.mxu0 0.0
    %85 = vmatpush.msra.mxu0 0.0
    %86 = vmatpush.msra.mxu0 0.0
    %87 = vmatpush.msra.mxu0 %v67
    %88 = vmatpush.msra.mxu0 %v66
    %89 = vmatpush.msra.mxu0 %v65
    %90 = vmatpush.msra.mxu0 %v64
    %91 = vmatmul.f32.gmra.mxu0 %v73
    %v92 = vpop.f32.mrf.mxu0
    %v93 = vadd.f32 0.0, %v92
    %94 = vdwg.mxu0
    %v96 = vperm.slane %v68, 0
    %v98 = vmul.f32 %v63, %v96
    %vm99 = vcmask 254976
    %v100 = vsel %vm99, %v98, 0.0
    %101 = vadd.xlane.f32.xlu0 %v100
    %v102 = vpop.xlane.xlu0 %101
    %v104 = vrot.slane %v93, 1
    %v105 = vperm.slane %v93, 0
    %v106 = vperm.slane %v104, 0
    %v109 = vmul.f32 %v105, %v69
    %v110 = vmul.f32 %v106, %v70
    %v111 = vsel %vm71, %v109, 0.0
    %112 = vadd.xlane.f32.xlu0 %v111
    %v113 = vpop.xlane.xlu0 %112
    %v114 = vsel %vm71, %v110, 0.0
    %115 = vadd.xlane.f32.xlu0 %v114
    %v116 = vpop.xlane.xlu0 %115
    %v118 = vperm.slane %v102, 0
    %v119 = vperm.slane %v102, 1
    %v122 = vadd.f32 %v113, %v118
    %v123 = vadd.f32 %v116, %v119
    %126 = vset.pattern.permute.xlu0 0
    %127 = vperm.xlu0 %126, %v122
    %v128 = vpop.permute.xlu0 %127
    %129 = vset.pattern.permute.xlu0 0
    %130 = vperm.xlu0 %129, %v123
    %v131 = vpop.permute.xlu0 %130
    %v132 = vlaneseq
    %v133 = vand.u32 %v132, 127
    %v134 = vperm.slane %v128, %v133
    %v135 = vperm.slane %v131, %v133
    %vm136 = vcmask 1041409
    %v137 = vsel %vm136, %v135, %v134
    %vm139 = vcmask 58368
    %v140 = vsel %vm139, %v137, -inf
    %141 = vmax.xlane.f32.xlu0 %v140
    %v142 = vpop.xlane.xlu0 %141
    %v144 = vperm.slane %v142, 0
    %v145 = vperm.slane %v142, 1
    %v148 = vsub.f32 %v122, %v144
    %v149 = vsub.f32 %v123, %v145
    %v150 = vmul.f32 %v148, 1.442695
    %v151 = vpow.pop %v150
    %v152 = vmul.f32 %v149, 1.442695
    %v153 = vpow.pop %v152
    %156 = vset.pattern.permute.xlu0 0
    %157 = vperm.xlu0 %156, %v151
    %v158 = vpop.permute.xlu0 %157
    %159 = vset.pattern.permute.xlu0 0
    %160 = vperm.xlu0 %159, %v153
    %v161 = vpop.permute.xlu0 %160
    %v162 = vperm.slane %v158, %v133
    %v163 = vperm.slane %v161, %v133
    %v164 = vsel %vm136, %v163, %v162
    %v166 = vsel %vm139, %v164, 0.0
    %167 = vadd.xlane.f32.xlu0 %v166
    %v168 = vpop.xlane.xlu0 %167
    %v170 = vperm.slane %v168, 0
    %v171 = vperm.slane %v168, 1
    %v174 = vrcp.pop %v170
    %v175 = vmul.f32 %v170, %v174
    %v176 = vsub.f32 1.0, %v175
    %v177 = vmul.f32 %v174, %v176
    %v178 = vadd.f32 %v174, %v177
    %vm179 = vweird.f32 %v170
    %vm180 = vweird.f32 %v174
    %vm181 = vmor %vm179, %vm180
    %v182 = vsel %vm181, %v174, %v178
    %v183 = vand.u32 2147483647, %v170
    %vm184 = vcmp.eq.f32.partialorder %v183, 8.507059e+37
    %v185 = vand.u32 %v170, 2147483648
    %v186 = vor.u32 1.1754944e-38, %v185
    %v187 = vsel %vm184, %v186, %v182
    %v188 = vmul.f32 %v151, %v187
    %v189 = vrcp.pop %v171
    %v190 = vmul.f32 %v171, %v189
    %v191 = vsub.f32 1.0, %v190
    %v192 = vmul.f32 %v189, %v191
    %v193 = vadd.f32 %v189, %v192
    %vm194 = vweird.f32 %v171
    %vm195 = vweird.f32 %v189
    %vm196 = vmor %vm194, %vm195
    %v197 = vsel %vm196, %v189, %v193
    %v198 = vand.u32 2147483647, %v171
    %vm199 = vcmp.eq.f32.partialorder %v198, 8.507059e+37
    %v200 = vand.u32 %v171, 2147483648
    %v201 = vor.u32 1.1754944e-38, %v200
    %v202 = vsel %vm199, %v201, %v197
    %v203 = vmul.f32 %v153, %v202
    %206 = vset.pattern.permute.xlu0 0
    %207 = vperm.xlu0 %206, %v188
    %v208 = vpop.permute.xlu0 %207
    %209 = vset.pattern.permute.xlu0 0
    %210 = vperm.xlu0 %209, %v203
    %v211 = vpop.permute.xlu0 %210
    %v212 = vperm.slane %v208, %v133
    %v213 = vperm.slane %v211, %v133
    %v214 = vsel %vm136, %v213, %v212
    %216 = vst.msk [vmem:[#allocation8] sm:$0x3] %vm139, %v214
    // Predicated region
    $region30: #{tpu_custom_call.1} parent=1 // pred_check
      _
    $region31: #{tpu_custom_call.1} parent=1 // pred_check_branch
      %218 = sbr.rel (0) target = $region33
    $region32: #{tpu_custom_call.1} parent=1 // pred_region
      %220 = vsyncadd [#allocation4], 0
      %s222 = sshll.u32 [#allocation8], 4
      %s223 = int_to_ptr.vmem [resolvable:$true] %s222
      %s224 = sshll.u32 %s4, 4
      %s225 = int_to_ptr.hbm [resolvable:$true] %s224
      %227 = dma.vmem_to_hbm [thread:$0]  %s223, 32, %s225, [#allocation4]
    $region33: #{tpu_custom_call.1} parent=1 // pred_fallthru
      _
    // Predicated region
    $region34: #{tpu_custom_call.1} parent=1 // pred_check
      _
    $region35: #{tpu_custom_call.1} parent=1 // pred_check_branch
      %229 = sbr.rel (0) target = $region37
    $region36: #{tpu_custom_call.1} parent=1 // pred_region
      %231 = dma.done [#allocation4], 32
    $region37: #{tpu_custom_call.1} parent=1 // pred_fallthru
      _
    %232 = vsyncpa [#allocation3], 1
    %233 = vsyncpa [#allocation6], 1
    %234 = vsyncpa [#allocation4], 1

</llo_original>
